<compile_context>
chip_gen: v7x
topology: tpu7x:2x2x1
jax: 0.10.0
libtpu: 0.0.40
codegen_flags: <defaults>
</compile_context>

<pallas_src>
import jax
import jax.numpy as jnp
from jax.experimental import pallas as pl
from jax.experimental.pallas import tpu as pltpu


def _rectified_kernel(x_ref, o_ref):
    # Compare in the input's native dtype; write float32 (PyTorch promotion).
    # Single vcmp + vsel per vreg — the kernel stays purely HBM-bound.
    o_ref[...] = jnp.where(x_ref[...] >= 0, jnp.float32(1.0), jnp.float32(-1.0))


_WIDTH = 1024     # lane-dense last dim: 8 f32 vregs wide -> unmasked vst runs
_SMALL_N = 1024   # below this a kernel launch is pure overhead


def _chip_config():
    """(f32-output tile bytes, tensorcores/chip, vmem_limit_bytes) for the local TPU."""
    kind = ""
    try:
        kind = jax.devices()[0].device_kind.lower()
    except Exception:
        pass  # unknown backend -> conservative defaults below
    if "v7" in kind or "tpu7" in kind:
        # 64 MiB VMEM/TC, ~3.2 TB/s HBM, 2 TCs: large tiles + explicit VMEM budget.
        return 8 << 20, 2, 48 << 20
    if "v6" in kind or "trillium" in kind:
        return 4 << 20, 1, 48 << 20
    # v5e / v5p / v4 / unknown: 2 MiB tiles keep 2x(in+out) double-buffering
    # inside v5e's 16 MiB default scoped-VMEM limit.
    return 2 << 20, 1, None


@jax.jit
def rectified(x):
    """Elementwise: 1.0 where x >= 0 else -1.0 (float32). Matches the PyTorch module."""
    orig_shape = x.shape
    n = x.size

    if n < _SMALL_N:
        # Tiny (or empty) input: plain fused XLA op, no kernel launch.
        out = jnp.where(x >= 0, jnp.float32(1.0), jnp.float32(-1.0))
        return out.reshape(orig_shape)

    out_tile_bytes, num_cores, vmem_limit = _chip_config()

    itemsize = jnp.dtype(x.dtype).itemsize
    # Packed-sublane granule: 8 rows for 4-byte dtypes, 16 for 2-byte, 32 for 1-byte.
    row_align = 8 * max(1, 4 // max(1, itemsize))
    # Rows of 1024 f32 outputs per tile, aligned to the granule.
    target_rows = max(row_align,
                      (out_tile_bytes // (_WIDTH * 4)) // row_align * row_align)

    x_flat = jnp.reshape(x, (-1,))

    if n % _WIDTH == 0:
        # Aligned fast path: lane-dense (rows, 1024) slab.
        rows = n // _WIDTH
        row_tile = min(target_rows, rows)
        if num_cores > 1 and n * 4 > (1 << 20):
            # >= 4 grid steps so both TensorCores get >= 2 blocks (pipelined DMA).
            per_core = -(-rows // (2 * num_cores))
            per_core = -(-per_core // row_align) * row_align
            row_tile = min(row_tile, per_core)
        if rows <= row_tile:
            grid, block = (1,), (rows, _WIDTH)        # single block: no pipeline overhead
        else:
            grid, block = (pl.cdiv(rows, row_tile),), (row_tile, _WIDTH)
        operand = x_flat.reshape(rows, _WIDTH)
        out_struct = jax.ShapeDtypeStruct((rows, _WIDTH), jnp.float32)
        index_map = lambda i: (i, 0)
    else:
        # Ragged total size: 1-D element grid over the flat array; Pallas masks
        # the partial final block in-kernel (no wrapper slice / pad / concat).
        tile_elems = target_rows * _WIDTH
        if num_cores > 1 and n * 4 > (1 << 20):
            per_core = -(-n // (2 * num_cores))
            granule = row_align * _WIDTH
            per_core = -(-per_core // granule) * granule
            tile_elems = min(tile_elems, per_core)
        if n <= tile_elems:
            grid, block = (1,), (n,)                  # full-extent block: any n allowed
        else:
            grid, block = (pl.cdiv(n, tile_elems),), (tile_elems,)
        operand = x_flat
        out_struct = jax.ShapeDtypeStruct((n,), jnp.float32)
        index_map = lambda i: (i,)

    out = pl.pallas_call(
        _rectified_kernel,
        out_shape=out_struct,
        grid_spec=pltpu.PrefetchScalarGridSpec(
            num_scalar_prefetch=0,
            grid=grid,
            in_specs=[pl.BlockSpec(block, index_map)],
            out_specs=pl.BlockSpec(block, index_map),
        ),
        compiler_params=pltpu.CompilerParams(
            dimension_semantics=("parallel",),
            vmem_limit_bytes=vmem_limit,
        ),
        cost_estimate=pl.CostEstimate(
            flops=0, transcendentals=0,
            bytes_accessed=n * itemsize + n * 4),
    )(operand)

    return out.reshape(orig_shape)


if __name__ == "__main__":
    key = jax.random.PRNGKey(0)
    x = jax.random.normal(key, (2, 4, 16, 16), dtype=jnp.float32)  # NCHW

    out = rectified(x)
    jax.block_until_ready(out)

    ref = jnp.where(x >= 0, jnp.float32(1.0), jnp.float32(-1.0))
    assert out.shape == x.shape
    assert out.dtype == jnp.float32
    assert bool(jnp.all(out == ref))

    # Non-1024-divisible total size: exercises the in-kernel masked 1-D path
    # (no wrapper slice / concat any more).
    x_odd = jax.random.normal(jax.random.PRNGKey(1), (3, 7, 33, 47), dtype=jnp.float32)
    out_odd = rectified(x_odd)
    jax.block_until_ready(out_odd)
    ref_odd = jnp.where(x_odd >= 0, jnp.float32(1.0), jnp.float32(-1.0))
    assert out_odd.shape == x_odd.shape and bool(jnp.all(out_odd == ref_odd))

    # Larger aligned input: exercises the tiled lane-dense 2-D path
    # (multiple grid steps on v5e / v7x).
    x_big = jax.random.normal(jax.random.PRNGKey(2), (16, 64, 32, 32), dtype=jnp.float32)
    out_big = rectified(x_big)
    jax.block_until_ready(out_big)
    ref_big = jnp.where(x_big >= 0, jnp.float32(1.0), jnp.float32(-1.0))
    assert out_big.shape == x_big.shape and bool(jnp.all(out_big == ref_big))

    # bf16 input: native-dtype (half-width) HBM reads, f32 output.
    x_bf16 = jax.random.normal(jax.random.PRNGKey(3), (4, 8, 32, 32),
                               dtype=jnp.float32).astype(jnp.bfloat16)
    out_bf16 = rectified(x_bf16)
    jax.block_until_ready(out_bf16)
    ref_bf16 = jnp.where(x_bf16 >= 0, jnp.float32(1.0), jnp.float32(-1.0))
    assert out_bf16.dtype == jnp.float32 and bool(jnp.all(out_bf16 == ref_bf16))

    print("KERNEL_OK")
</pallas_src>

<mosaic_0001>
module attributes {stable_mosaic.version = 11 : i64} {
  func.func @_rectified_kernel(%arg0: i32, %arg1: memref<2x1024xf32, #tpu.memory_space<vmem>>, %arg2: memref<2x1024xf32, #tpu.memory_space<vmem>>) attributes {dimension_semantics = [#tpu.dimension_semantics<parallel>], iteration_bounds = array<i64: 1>, scalar_prefetch = 0 : i64, scratch_operands = 0 : i64, tpu.core_type = #tpu.core_type<tc>, window_params = [{transform_indices = @transform_0, window_bounds = array<i64: 2, 1024>}, {transform_indices = @transform_1, window_bounds = array<i64: 2, 1024>}]} {
    %c0 = arith.constant 0 : index
    %c0_0 = arith.constant 0 : index
    %0 = vector.load %arg1[%c0, %c0_0] : memref<2x1024xf32, #tpu.memory_space<vmem>>, vector<2x1024xf32>
    %cst = arith.constant 0.000000e+00 : f32
    %1 = vector.broadcast %cst : f32 to vector<2x1024xf32>
    %2 = arith.cmpf oge, %0, %1 : vector<2x1024xf32>
    %cst_1 = arith.constant 1.000000e+00 : f32
    %cst_2 = arith.constant -1.000000e+00 : f32
    %3 = vector.broadcast %cst_1 : f32 to vector<2x1024xf32>
    %4 = vector.broadcast %cst_2 : f32 to vector<2x1024xf32>
    %5 = arith.select %2, %3, %4 : vector<2x1024xi1>, vector<2x1024xf32>
    %c0_3 = arith.constant 0 : index
    %c0_4 = arith.constant 0 : index
    %6 = vector.load %arg2[%c0_3, %c0_4] : memref<2x1024xf32, #tpu.memory_space<vmem>>, vector<2x1024xf32>
    tpu.vector_store %arg2[%c0_3, %c0_4], %5 {strides = array<i32>} : memref<2x1024xf32, #tpu.memory_space<vmem>>, vector<2x1024xf32>,
    return
  }
  func.func @transform_0(%arg0: i32) -> (i32, i32) {
    %c0_i32 = arith.constant 0 : i32
    %c0_i32_0 = arith.constant 0 : i32
    return %arg0, %c0_i32 : i32, i32
  }
  func.func @transform_1(%arg0: i32) -> (i32, i32) {
    %c0_i32 = arith.constant 0 : i32
    %c0_i32_0 = arith.constant 0 : i32
    return %arg0, %c0_i32 : i32, i32
  }
}

</mosaic_0001>

<llo_original>
// kernel: rectified.1
$region0: #{rectified.1}
  #allocation0 [shape = 'u32[]', space=smem, size = 0x4, offset = 0x4, fixed_abs, tag = 'smem constant byte address 0x4 - core index']
  #allocation1 [shape = 'u32[144,128]{1,0:T(1,128)}', space=vmem, size = 0x12000, scoped, tag = 'internal scratch']
  %s0 = inlined_call_operand.vmem [shape: f32[2,1024], index: 0, kind: input, shape index: {}]
  %s1 = inlined_call_operand.vmem [shape: f32[2,1024], index: 1, kind: output, shape index: {}]
  %s2 = sld [smem:[#allocation0]]
  $region14: #{rectified.1} parent=0
    _
  %s4 = ssub.s32 1, %s2
  %s5 = scalar_select 0, %s4, %s2
  // Predicated region
  $region2: #{rectified.1} parent=0 // pred_check
    _
  $region3: #{rectified.1} parent=0 // pred_check_branch
    %7 = sbr.rel (0) target = $region5
  $region4: #{rectified.1} parent=0 // pred_region
    _
  $region5: #{rectified.1} parent=0 // pred_fallthru
    _
  %v8 = vld [vmem:[%s0] sm:$0xff]
  %v9 = vld [vmem:[%s0 + $0x8] sm:$0xff]
  %vm10 = vcmp.ge.f32.partialorder %v8, 0.0
  %vm11 = vcmp.ge.f32.partialorder %v9, 0.0
  %v12 = vsel %vm10, 1.0, -1.0
  %v13 = vsel %vm11, 1.0, -1.0
  %14 = vst [vmem:[%s1] sm:$0xff] %v12
  %15 = vst [vmem:[%s1 + $0x8] sm:$0xff] %v13
  // Predicated region
  $region6: #{rectified.1} parent=0 // pred_check
    _
  $region7: #{rectified.1} parent=0 // pred_check_branch
    %17 = sbr.rel (0) target = $region9
  $region8: #{rectified.1} parent=0 // pred_region
    _
  $region9: #{rectified.1} parent=0 // pred_fallthru
    _
  // Predicated region
  $region10: #{rectified.1} parent=0 // pred_check
    _
  $region11: #{rectified.1} parent=0 // pred_check_branch
    %19 = sbr.rel (0) target = $region13
  $region12: #{rectified.1} parent=0 // pred_region
    _
  $region13: #{rectified.1} parent=0 // pred_fallthru
    _

</llo_original>
